<compile_context>
chip_gen: v7x
topology: tpu7x:2x2x1
jax: 0.10.0
libtpu: 0.0.40
codegen_flags: <defaults>
</compile_context>

<pallas_src>
import jax
import jax.numpy as jnp
from jax.experimental import pallas as pl
from jax.experimental.pallas import tpu as pltpu


_LANE = 128       # output minor dim padded to a multiple of this (lane-dense)
_SUBLANE = 8      # f32 sublane height
_TM = 512         # M tile for large flattened batches
_MIN_TILE = 64    # tile (with >= 2 grid steps) once M >= 2 * _MIN_TILE


def _round_up(n, m):
    return ((n + m - 1) // m) * m


def _linear_kernel(x_ref, w_ref, b_ref, o_ref):
    # x_ref: (TM, H) input dtype, w_ref: (H, E_pad) bf16,
    # b_ref: (1, E_pad) f32,      o_ref: (TM, E_pad) input dtype.
    # bf16 x bf16 MXU matmul with f32 accumulator; bias folded into the store.
    x = x_ref[...].astype(jnp.bfloat16)
    acc = jnp.dot(x, w_ref[...], preferred_element_type=jnp.float32)
    o_ref[...] = (acc + b_ref[...]).astype(o_ref.dtype)


def pack_linear_params(weight, bias):
    """One-time parameter prep (do at model-build time, NOT per forward call).

    weight: (E, H), bias: (E,) ->
      w_packed: (H, E_pad) bf16  (transposed once, E padded to a multiple of
                                  128 -> lane-dense weight, plain M,H @ H,E)
      b_packed: (1, E_pad) f32   (added to the f32 accumulator)
    """
    E, H = weight.shape
    e_pad = _round_up(E, _LANE)
    w_packed = jnp.pad(weight.T, ((0, 0), (0, e_pad - E))).astype(jnp.bfloat16)
    b_packed = jnp.pad(bias, (0, e_pad - E)).reshape(1, e_pad).astype(jnp.float32)
    return w_packed, b_packed


def linear_norm_packed(x, w_packed, b_packed, emb_dim):
    """x: (..., H) -> (..., emb_dim), using pre-packed parameters."""
    orig_shape = x.shape
    H = orig_shape[-1]
    h_w, e_pad = w_packed.shape
    assert h_w == H, "packed weight H does not match activation H"
    x2 = x.reshape(-1, H)
    M = x2.shape[0]
    in_bytes = x2.dtype.itemsize
    out_dtype = x.dtype

    cost = pl.CostEstimate(
        flops=2 * M * H * e_pad,
        transcendentals=0,
        bytes_accessed=(in_bytes * M * H + 2 * H * e_pad + 4 * e_pad
                        + in_bytes * M * e_pad),
    )
    out_shape = jax.ShapeDtypeStruct((M, e_pad), out_dtype)

    if M < 2 * _MIN_TILE:
        # Tiny / latency-bound: single grid-less block, everything resident in
        # VMEM, no per-step pipeline bookkeeping, no padding of x at all.
        out = pl.pallas_call(
            _linear_kernel,
            out_shape=out_shape,
            in_specs=[
                pl.BlockSpec(memory_space=pltpu.MemorySpace.VMEM),
                pl.BlockSpec(memory_space=pltpu.MemorySpace.VMEM),
                pl.BlockSpec(memory_space=pltpu.MemorySpace.VMEM),
            ],
            out_specs=pl.BlockSpec(memory_space=pltpu.MemorySpace.VMEM),
            cost_estimate=cost,
        )(x2, w_packed, b_packed)
    else:
        # Tiled over M. Large batches use _TM-row tiles; mid-sized batches get
        # a 2-step grid so both v7x TensorCores can be used ("parallel" axis).
        if M >= 2 * _TM:
            tm = _TM
        else:
            tm = _round_up(pl.cdiv(M, 2), _SUBLANE)
        grid_m = pl.cdiv(M, tm)   # ragged last tile is clipped by Pallas

        # VMEM budget: double-buffered x/out tiles + resident weight/bias
        # (double-buffered by default, they are tiny) + in-kernel temps.
        vmem_bytes = (2 * tm * H * in_bytes                    # x tiles
                      + 2 * H * e_pad * 2                      # bf16 weight
                      + 2 * e_pad * 4                          # bias
                      + 2 * tm * e_pad * out_dtype.itemsize    # out tiles
                      + tm * H * 2 + tm * e_pad * 4)           # bf16 x, f32 acc
        vmem_limit = min(2 * vmem_bytes + (2 << 20), 64 << 20)

        out = pl.pallas_call(
            _linear_kernel,
            out_shape=out_shape,
            grid=(grid_m,),
            in_specs=[
                pl.BlockSpec((tm, H), lambda i: (i, 0)),
                pl.BlockSpec((H, e_pad), lambda i: (0, 0)),
                pl.BlockSpec((1, e_pad), lambda i: (0, 0)),
            ],
            out_specs=pl.BlockSpec((tm, e_pad), lambda i: (i, 0)),
            compiler_params=pltpu.CompilerParams(
                dimension_semantics=("parallel",),
                vmem_limit_bytes=vmem_limit),
            cost_estimate=cost,
        )(x2, w_packed, b_packed)

    out = out[:, :emb_dim]
    return out.reshape(orig_shape[:-1] + (emb_dim,))


def linear_norm(x, weight, bias):
    """Convenience wrapper matching nn.Linear with weight (E, H), bias (E,).

    NOTE: hot paths should call pack_linear_params() once and then
    linear_norm_packed(); this wrapper re-packs the parameters every call.
    """
    w_packed, b_packed = pack_linear_params(weight, bias)
    return linear_norm_packed(x, w_packed, b_packed, weight.shape[0])


if __name__ == "__main__":
    # hp.embedder.lstm_hidden = 32, hp.embedder.emb_dim = 64 (small synthetic)
    batch, lstm_hidden, emb_dim = 8, 32, 64

    key = jax.random.PRNGKey(0)
    kx, kw, kb, kx2 = jax.random.split(key, 4)

    x = jax.random.normal(kx, (batch, lstm_hidden), dtype=jnp.float32)
    # Deterministic "nn.Linear"-style params (synthetic, not a checkpoint).
    bound = 1.0 / (lstm_hidden ** 0.5)
    weight = jax.random.uniform(kw, (emb_dim, lstm_hidden),
                                minval=-bound, maxval=bound, dtype=jnp.float32)
    bias = jax.random.uniform(kb, (emb_dim,),
                              minval=-bound, maxval=bound, dtype=jnp.float32)

    # Pack (pad + transpose + bf16-cast) parameters once, then run the kernel.
    w_packed, b_packed = pack_linear_params(weight, bias)

    # 1) Tiny grid-less path (M = 8).
    out = linear_norm_packed(x, w_packed, b_packed, emb_dim)
    out = jax.block_until_ready(out)
    ref = x @ weight.T + bias
    assert out.shape == (batch, emb_dim)
    # bf16 operands (f32 accumulation) -> relaxed tolerance vs. the f32 ref.
    assert jnp.allclose(out, ref, atol=5e-2, rtol=5e-2)

    # 2) Tiled "parallel"-grid path with a ragged last M tile (M = 200).
    x_big = jax.random.normal(kx2, (2, 100, lstm_hidden), dtype=jnp.float32)
    out_big = linear_norm_packed(x_big, w_packed, b_packed, emb_dim)
    out_big = jax.block_until_ready(out_big)
    ref_big = x_big @ weight.T + bias
    assert out_big.shape == (2, 100, emb_dim)
    assert jnp.allclose(out_big, ref_big, atol=5e-2, rtol=5e-2)

    print("KERNEL_OK")
</pallas_src>

<mosaic_0001>
module attributes {stable_mosaic.version = 11 : i64} {
  func.func @_linear_kernel(%arg0: memref<8x32xf32, #tpu.memory_space<vmem>>, %arg1: memref<32x128xbf16, #tpu.memory_space<vmem>>, %arg2: memref<1x128xf32, #tpu.memory_space<vmem>>, %arg3: memref<8x128xf32, #tpu.memory_space<vmem>>) attributes {dimension_semantics = [], scalar_prefetch = 0 : i64, scratch_operands = 0 : i64, tpu.core_type = #tpu.core_type<tc>} {
    %c0 = arith.constant 0 : index
    %c0_0 = arith.constant 0 : index
    %0 = vector.load %arg0[%c0, %c0_0] : memref<8x32xf32, #tpu.memory_space<vmem>>, vector<8x32xf32>
    %1 = arith.truncf %0 : vector<8x32xf32> to vector<8x32xbf16>
    %c0_1 = arith.constant 0 : index
    %c0_2 = arith.constant 0 : index
    %2 = vector.load %arg1[%c0_1, %c0_2] : memref<32x128xbf16, #tpu.memory_space<vmem>>, vector<32x128xbf16>
    %cst = arith.constant dense<0.000000e+00> : vector<8x128xf32>
    %3 = tpu.matmul %1, %2, %cst {dimension_numbers = #tpu.dot_dimension_numbers<[1], [0], [0], [1], [0, 0, 1, 1], [], []>} : vector<8x32xbf16>, vector<32x128xbf16>, vector<8x128xf32> -> vector<8x128xf32>
    %c0_3 = arith.constant 0 : index
    %c0_4 = arith.constant 0 : index
    %4 = vector.load %arg2[%c0_3, %c0_4] : memref<1x128xf32, #tpu.memory_space<vmem>>, vector<1x128xf32>
    %5 = vector.broadcast %4 : vector<1x128xf32> to vector<8x128xf32>
    %6 = arith.addf %3, %5 : vector<8x128xf32>
    %c0_5 = arith.constant 0 : index
    %c0_6 = arith.constant 0 : index
    %7 = vector.load %arg3[%c0_5, %c0_6] : memref<8x128xf32, #tpu.memory_space<vmem>>, vector<8x128xf32>
    tpu.vector_store %arg3[%c0_5, %c0_6], %6 {strides = array<i32>} : memref<8x128xf32, #tpu.memory_space<vmem>>, vector<8x128xf32>,
    return
  }
}

</mosaic_0001>

<llo_original>
// kernel: tpu_custom_call.1
$region0: #{tpu_custom_call.1}
  #allocation0 [shape = 'u32[]', space=smem, size = 0x4, offset = 0x4, fixed_abs, tag = 'smem constant byte address 0x4 - core index']
  #allocation1 [shape = 'u32[144,128]{1,0:T(1,128)}', space=vmem, size = 0x12000, scoped, tag = 'internal scratch']
  %s0 = inlined_call_operand.hbm [shape: f32[8,32], index: 0, kind: input, shape index: {}]
  %s1 = inlined_call_operand.hbm [shape: bf16[32,128], index: 1, kind: input, shape index: {}]
  %s2 = inlined_call_operand.vmem [shape: f32[1,128], index: 2, kind: input, shape index: {}]
  %s3 = inlined_call_operand.hbm [shape: f32[8,128], index: 3, kind: output, shape index: {}]
  %s4 = sld [smem:[#allocation0]]
  $region30: #{tpu_custom_call.1} parent=0
    _
  %s6 = ssub.s32 1, %s4
  %s7 = scalar_select 0, %s6, %s4
  $region1: #{tpu_custom_call.1} parent=0
    #allocation2 [shape = 'u8[4096]{0}', space=vmem, size = 0x1000, scoped, tag = 'input window, operand 0, single buffered']
    #allocation3 [shape = 's32[1]{0}', space=sflag, size = 0x4, scoped, tag = 'scoped memory for tpu_custom_call.1']
    #allocation4 [shape = 's32[1]{0}', space=sflag, size = 0x4, scoped, tag = 'scoped memory for tpu_custom_call.1']
    #allocation5 [shape = 'u8[8192]{0}', space=vmem, size = 0x2000, scoped, tag = 'input window, operand 1, single buffered']
    #allocation6 [shape = 's32[1]{0}', space=sflag, size = 0x4, scoped, tag = 'scoped memory for tpu_custom_call.1']
    #allocation7 [shape = 'u8[4096]{0}', space=vmem, size = 0x1000, scoped, tag = 'output window, operand 0, single buffered']
    %8 = vsyncpa [#allocation3], 0
    %9 = vsyncpa [#allocation6], 0
    %10 = vsyncpa [#allocation4], 0
    // Predicated region
    $region2: #{tpu_custom_call.1} parent=1 // pred_check
      _
    $region3: #{tpu_custom_call.1} parent=1 // pred_check_branch
      %12 = sbr.rel (0) target = $region5
    $region4: #{tpu_custom_call.1} parent=1 // pred_region
      %s14 = ssub.s32 128, 128
      %15 = vsyncadd [#allocation3], %s14
      %s17 = sshll.u32 [#allocation2], 4
      %s18 = int_to_ptr.vmem [resolvable:$true] %s17
      %20 = dma.hbm_to_vmem [thread:$0]  %s0, 128, %s18, [#allocation3]
    $region5: #{tpu_custom_call.1} parent=1 // pred_fallthru
      _
    // Predicated region
    $region6: #{tpu_custom_call.1} parent=1 // pred_check
      _
    $region7: #{tpu_custom_call.1} parent=1 // pred_check_branch
      %22 = sbr.rel (0) target = $region9
    $region8: #{tpu_custom_call.1} parent=1 // pred_region
      %s24 = ssub.s32 256, 256
      %25 = vsyncadd [#allocation6], %s24
      %s26 = sshll.u32 [#allocation5], 4
      %s27 = int_to_ptr.vmem [resolvable:$true] %s26
      %32 = dma.hbm_to_vmem [thread:$0]  %s1, 256, %s27, [#allocation6], 64, 64, 4
    $region9: #{tpu_custom_call.1} parent=1 // pred_fallthru
      _
    // Predicated region
    $region10: #{tpu_custom_call.1} parent=1 // pred_check
      _
    $region11: #{tpu_custom_call.1} parent=1 // pred_check_branch
      %34 = sbr.rel (0) target = $region13
    $region12: #{tpu_custom_call.1} parent=1 // pred_region
      _
    $region13: #{tpu_custom_call.1} parent=1 // pred_fallthru
      _
    // Predicated region
    $region14: #{tpu_custom_call.1} parent=1 // pred_check
      _
    $region15: #{tpu_custom_call.1} parent=1 // pred_check_branch
      %36 = sbr.rel (0) target = $region17
    $region16: #{tpu_custom_call.1} parent=1 // pred_region
      %37 = dma.done [#allocation3], 128
    $region17: #{tpu_custom_call.1} parent=1 // pred_fallthru
      _
    // Predicated region
    $region18: #{tpu_custom_call.1} parent=1 // pred_check
      _
    $region19: #{tpu_custom_call.1} parent=1 // pred_check_branch
      %39 = sbr.rel (0) target = $region21
    $region20: #{tpu_custom_call.1} parent=1 // pred_region
      %40 = dma.done [#allocation6], 256
    $region21: #{tpu_custom_call.1} parent=1 // pred_fallthru
      _
    %v42 = vld [vmem:[#allocation2] sm:$0xff]
    %v43 = vpack.c.bf16 %v42, %v42
    %v44 = vld [vmem:[#allocation5] sm:$0xf]
    %v45 = vld [vmem:[#allocation5 + $0x4] sm:$0xf]
    %v46 = vld [vmem:[#allocation5 + $0x8] sm:$0xf]
    %v47 = vld [vmem:[#allocation5 + $0xc] sm:$0xf]
    %v48 = vld [vmem:[%s2] sm:$0x1]
    %v50 = vlaneseq
    %v51 = vshrl.u32 %v50, 7
    %v52 = vsub.s32 0, %v51
    %v53 = vrot.slane %v48, %v52
    %v59 = vunpack.c.l.b16 %v44
    %v60 = vunpack.c.l.b16 %v45
    %v61 = vunpack.c.l.b16 %v46
    %v62 = vunpack.c.l.b16 %v47
    %v63 = vpack.c.b16 %v60, %v59
    %v64 = vpack.c.b16 %v62, %v61
    %vm67 = vcmask 261120
    %v69 = vsel %vm67, %v43, 0
    %71 = vmatprep.subr.bf16.mxu0 0
    %72 = vmatpush1.bf16.msra.mxu0 %v63
    %73 = vmatprep.subr.bf16.mxu0 0
    %74 = vmatpush1.bf16.msra.mxu0 %v64
    %75 = vmatprep.subr.bf16.mxu0 0
    %76 = vmatpush1.bf16.msra.mxu0 0
    %77 = vmatprep.subr.bf16.mxu0 0
    %78 = vmatpush1.bf16.msra.mxu0 0
    %79 = vmatprep.subr.bf16.mxu0 0
    %80 = vmatpush1.bf16.msra.mxu0 0
    %81 = vmatprep.subr.bf16.mxu0 0
    %82 = vmatpush1.bf16.msra.mxu0 0
    %83 = vmatprep.subr.bf16.mxu0 0
    %84 = vmatpush1.bf16.msra.mxu0 0
    %85 = vmatprep.subr.bf16.mxu0 0
    %86 = vmatpush1.bf16.msra.mxu0 0
    %87 = vmatprep.subr.bf16.mxu0 0
    %88 = vmatpush1.bf16.msra.mxu0 0
    %89 = vmatprep.subr.bf16.mxu0 0
    %90 = vmatpush1.bf16.msra.mxu0 0
    %91 = vmatprep.subr.bf16.mxu0 0
    %92 = vmatpush1.bf16.msra.mxu0 0
    %93 = vmatprep.subr.bf16.mxu0 0
    %94 = vmatpush1.bf16.msra.mxu0 0
    %95 = vmatprep.subr.bf16.mxu0 0
    %96 = vmatpush1.bf16.msra.mxu0 0
    %97 = vmatprep.subr.bf16.mxu0 0
    %98 = vmatpush1.bf16.msra.mxu0 0
    %99 = vmatprep.subr.bf16.mxu0 0
    %100 = vmatpush1.bf16.msra.mxu0 0
    %101 = vmatprep.subr.bf16.mxu0 0
    %102 = vmatpush1.bf16.msra.mxu0 0
    %103 = vmatprep.mubr.bf16.mxu0 0
    %104 = vmatmul.mubr.bf16.gmra.mrb[0].mxu0 %v69
    %v105 = vpop.f32.mrb[0].mxu0
    %v106 = vadd.f32 %v53, %v105
    %v107 = vpop.f32.mrb[0].mxu0
    %v108 = vpop.f32.mrb[0].mxu0
    %v109 = vpop.f32.mrb[0].mxu0
    %110 = vdwg.mxu0
    %111 = vst [vmem:[#allocation7] sm:$0xff] %v106
    // Predicated region
    $region22: #{tpu_custom_call.1} parent=1 // pred_check
      _
    $region23: #{tpu_custom_call.1} parent=1 // pred_check_branch
      %113 = sbr.rel (0) target = $region25
    $region24: #{tpu_custom_call.1} parent=1 // pred_region
      %s115 = ssub.s32 128, 128
      %116 = vsyncadd [#allocation4], %s115
      %s118 = sshll.u32 [#allocation7], 4
      %s119 = int_to_ptr.vmem [resolvable:$true] %s118
      %121 = dma.vmem_to_hbm [thread:$0]  %s119, 128, %s3, [#allocation4]
    $region25: #{tpu_custom_call.1} parent=1 // pred_fallthru
      _
    // Predicated region
    $region26: #{tpu_custom_call.1} parent=1 // pred_check
      _
    $region27: #{tpu_custom_call.1} parent=1 // pred_check_branch
      %123 = sbr.rel (0) target = $region29
    $region28: #{tpu_custom_call.1} parent=1 // pred_region
      %124 = dma.done [#allocation4], 128
    $region29: #{tpu_custom_call.1} parent=1 // pred_fallthru
      _
    %125 = vsyncpa [#allocation3], 1
    %126 = vsyncpa [#allocation6], 1
    %127 = vsyncpa [#allocation4], 1

</llo_original>
